<compile_context>
chip_gen: v7x
topology: tpu7x:2x2x1
jax: 0.10.0
libtpu: 0.0.40
codegen_flags: <defaults>
</compile_context>

<pallas_src>
import functools

import jax
import jax.numpy as jnp
from jax.experimental import pallas as pl
from jax.experimental.pallas import tpu as pltpu


def residual_kernel(seed_ref, x_ref, alpha_ref, beta_ref, w_ref, b_ref, o_ref,
                    *, eps: float, dropout_rate: float, tm: int):
    x = x_ref[...].astype(jnp.float32)                         # (TM, D)
    d = x.shape[-1]

    # --- LayerNormalization (torch semantics: unbiased std, eps added to std) ---
    mean = jnp.mean(x, axis=-1, keepdims=True)
    xc = x - mean
    var = jnp.sum(xc * xc, axis=-1, keepdims=True) * (1.0 / (d - 1))  # unbiased
    inv_std = pl.reciprocal(jnp.sqrt(var) + eps, approx=True)          # EUP slot
    xn = alpha_ref[...] * (xc * inv_std) + beta_ref[...]

    # --- synthetic sublayer: Linear(d_model -> d_model), bf16 on the MXU, f32 acc ---
    y = jnp.dot(xn.astype(jnp.bfloat16), w_ref[...],
                preferred_element_type=jnp.float32) + b_ref[...]

    # --- dropout (training mode) via counter-based hash PRNG ---
    if dropout_rate > 0.0:
        keep_prob = 1.0 - dropout_rate
        row0 = pl.program_id(0) * tm
        r = jax.lax.broadcasted_iota(jnp.int32, y.shape, 0) + row0
        c = jax.lax.broadcasted_iota(jnp.int32, y.shape, 1)
        h = (r * d + c).astype(jnp.uint32) ^ seed_ref[0].astype(jnp.uint32)
        # lowbias32 integer mix -> uniform uint32 bits per element
        h = (h ^ (h >> 16)) * jnp.uint32(0x7FEB352D)
        h = (h ^ (h >> 15)) * jnp.uint32(0x846CA68B)
        h = h ^ (h >> 16)
        thresh = jnp.uint32(min(int(keep_prob * (2 ** 32)), 2 ** 32 - 1))
        y = jnp.where(h < thresh, y * (1.0 / keep_prob), 0.0)

    # --- residual connection ---
    o_ref[...] = (x + y).astype(o_ref.dtype)


def _round_up(a: int, m: int) -> int:
    return -(-a // m) * m


def residual_connection(x, alpha, beta, w, b, seed, *,
                        eps: float = 1e-6, dropout_rate: float = 0.0,
                        tm: int = 256):
    B, S, D = x.shape
    rows = B * S
    x2 = x.reshape(rows, D)

    # Row tile: large (amortizes grid-step overhead, feeds the MXU), multiple of 8,
    # clamped for tiny inputs.  Rows are zero-padded to a multiple of the tile.
    tm_eff = _round_up(min(tm, _round_up(rows, 8)), 8)
    rows_p = _round_up(rows, tm_eff)
    if rows_p != rows:
        x2 = jnp.pad(x2, ((0, rows_p - rows), (0, 0)))

    # bf16 weights: half the VMEM/HBM footprint, MXU-native on v6e/v7x.
    w_bf16 = w.astype(jnp.bfloat16)

    itemsize = jnp.dtype(x.dtype).itemsize
    vmem_bytes = (2 * tm_eff * D * 4            # x tiles, f32, double-buffered
                  + 2 * tm_eff * D * itemsize   # out tiles, double-buffered
                  + D * D * 2                   # W bf16, single-buffered
                  + 3 * D * 4)                  # alpha / beta / b
    vmem_limit = int(min(48 << 20, max(16 << 20, 2 * vmem_bytes)))

    kern = functools.partial(residual_kernel, eps=eps,
                             dropout_rate=dropout_rate, tm=tm_eff)
    single = dict(pipeline_mode=pl.Buffered(1))   # grid-invariant -> 1 buffer

    out = pl.pallas_call(
        kern,
        out_shape=jax.ShapeDtypeStruct((rows_p, D), x.dtype),
        grid_spec=pltpu.PrefetchScalarGridSpec(
            num_scalar_prefetch=1,                                # dropout seed -> SMEM
            grid=(rows_p // tm_eff,),
            in_specs=[
                pl.BlockSpec((tm_eff, D), lambda i, seed: (i, 0)),            # x tile
                pl.BlockSpec((1, D), lambda i, seed: (0, 0), **single),       # LN alpha
                pl.BlockSpec((1, D), lambda i, seed: (0, 0), **single),       # LN bias
                pl.BlockSpec((D, D), lambda i, seed: (0, 0), **single),       # W (bf16)
                pl.BlockSpec((1, D), lambda i, seed: (0, 0), **single),       # b
            ],
            out_specs=pl.BlockSpec((tm_eff, D), lambda i, seed: (i, 0)),
        ),
        compiler_params=pltpu.CompilerParams(
            dimension_semantics=("parallel",),
            vmem_limit_bytes=vmem_limit),
    )(seed, x2, alpha, beta, w_bf16, b)

    if rows_p != rows:
        out = out[:rows]
    return out.reshape(B, S, D)


def reference(x, alpha, beta, w, b, eps):
    mean = x.mean(axis=-1, keepdims=True)
    std = jnp.std(x, axis=-1, ddof=1, keepdims=True)
    xn = alpha.reshape(-1) * (x - mean) / (std + eps) + beta.reshape(-1)
    y = xn @ w + b.reshape(-1)
    return x + y           # dropout identity (eval mode)


if __name__ == "__main__":
    key = jax.random.PRNGKey(0)
    B, S, D = 2, 8, 32
    kx, kw, kb = jax.random.split(key, 3)

    x = jax.random.normal(kx, (B, S, D), dtype=jnp.float32)

    # LayerNormalization params exactly as in __init__: alpha=ones, bias=zeros
    alpha = jnp.ones((1, D), jnp.float32)
    beta = jnp.zeros((1, D), jnp.float32)

    # deterministic synthetic sublayer (Linear d_model -> d_model)
    w = jax.random.normal(kw, (D, D), dtype=jnp.float32) * (1.0 / (D ** 0.5))
    b = (jax.random.normal(kb, (D,), dtype=jnp.float32) * 0.01).reshape(1, D)

    seed = jnp.array([0], dtype=jnp.int32)

    # 1) eval-mode (dropout = identity): verify against pure-JAX f32 reference.
    #    The kernel matmul is bf16 (MXU) and the LN reciprocal is approximate,
    #    so the tolerance is loosened accordingly.
    out = residual_connection(x, alpha, beta, w, b, seed, dropout_rate=0.0)
    out = jax.block_until_ready(out)
    ref = reference(x, alpha, beta, w, b, 1e-6)
    assert out.shape == x.shape and out.dtype == x.dtype
    assert jnp.allclose(out, ref, atol=5e-2, rtol=5e-2), "mismatch vs reference"

    # 2) training-mode dropout (p=0.1) with the in-kernel hash PRNG
    out_drop = residual_connection(x, alpha, beta, w, b, seed, dropout_rate=0.1)
    out_drop = jax.block_until_ready(out_drop)
    assert out_drop.shape == x.shape

    print("KERNEL_OK")
</pallas_src>

<mosaic_0001>
module attributes {stable_mosaic.version = 11 : i64} {
  func.func @residual_kernel(%arg0: i32, %arg1: memref<1xi32, #tpu.memory_space<smem>>, %arg2: memref<16x32xf32, #tpu.memory_space<vmem>>, %arg3: memref<1x32xf32, #tpu.memory_space<vmem>>, %arg4: memref<1x32xf32, #tpu.memory_space<vmem>>, %arg5: memref<32x32xbf16, #tpu.memory_space<vmem>>, %arg6: memref<1x32xf32, #tpu.memory_space<vmem>>, %arg7: memref<16x32xf32, #tpu.memory_space<vmem>>) attributes {dimension_semantics = [#tpu.dimension_semantics<parallel>], iteration_bounds = array<i64: 1>, scalar_prefetch = 1 : i64, scratch_operands = 0 : i64, tpu.core_type = #tpu.core_type<tc>, window_params = [{transform_indices = @transform_0, window_bounds = array<i64: 16, 32>}, {pipeline_mode = #tpu.pipeline_mode<synchronous>, transform_indices = @transform_1, window_bounds = array<i64: 1, 32>}, {pipeline_mode = #tpu.pipeline_mode<synchronous>, transform_indices = @transform_2, window_bounds = array<i64: 1, 32>}, {pipeline_mode = #tpu.pipeline_mode<synchronous>, transform_indices = @transform_3, window_bounds = array<i64: 32, 32>}, {pipeline_mode = #tpu.pipeline_mode<synchronous>, transform_indices = @transform_4, window_bounds = array<i64: 1, 32>}, {transform_indices = @transform_5, window_bounds = array<i64: 16, 32>}]} {
    %c0 = arith.constant 0 : index
    %c0_0 = arith.constant 0 : index
    %0 = vector.load %arg2[%c0, %c0_0] : memref<16x32xf32, #tpu.memory_space<vmem>>, vector<16x32xf32>
    %cst = arith.constant dense<0.000000e+00> : vector<16xf32>
    %1 = vector.multi_reduction <add>, %0, %cst [1] : vector<16x32xf32> to vector<16xf32>
    %2 = vector.shape_cast %1 : vector<16xf32> to vector<16x1xf32>
    %cst_1 = arith.constant 3.200000e+01 : f32
    %3 = vector.broadcast %cst_1 : f32 to vector<16x1xf32>
    %4 = arith.divf %2, %3 : vector<16x1xf32>
    %5 = vector.broadcast %4 : vector<16x1xf32> to vector<16x32xf32>
    %6 = arith.subf %0, %5 : vector<16x32xf32>
    %7 = arith.mulf %6, %6 : vector<16x32xf32>
    %cst_2 = arith.constant dense<0.000000e+00> : vector<16xf32>
    %8 = vector.multi_reduction <add>, %7, %cst_2 [1] : vector<16x32xf32> to vector<16xf32>
    %9 = vector.shape_cast %8 : vector<16xf32> to vector<16x1xf32>
    %cst_3 = arith.constant 0.0322580636 : f32
    %10 = vector.broadcast %cst_3 : f32 to vector<16x1xf32>
    %11 = arith.mulf %9, %10 : vector<16x1xf32>
    %12 = math.sqrt %11 : vector<16x1xf32>
    %cst_4 = arith.constant 9.99999997E-7 : f32
    %13 = vector.broadcast %cst_4 : f32 to vector<16x1xf32>
    %14 = arith.addf %12, %13 : vector<16x1xf32>
    %15 = tpu.reciprocal %14 {approx = true} : vector<16x1xf32> -> vector<16x1xf32>
    %c0_5 = arith.constant 0 : index
    %c0_6 = arith.constant 0 : index
    %16 = vector.load %arg3[%c0_5, %c0_6] : memref<1x32xf32, #tpu.memory_space<vmem>>, vector<1x32xf32>
    %17 = vector.broadcast %15 : vector<16x1xf32> to vector<16x32xf32>
    %18 = arith.mulf %6, %17 : vector<16x32xf32>
    %19 = vector.broadcast %16 : vector<1x32xf32> to vector<16x32xf32>
    %20 = arith.mulf %19, %18 : vector<16x32xf32>
    %c0_7 = arith.constant 0 : index
    %c0_8 = arith.constant 0 : index
    %21 = vector.load %arg4[%c0_7, %c0_8] : memref<1x32xf32, #tpu.memory_space<vmem>>, vector<1x32xf32>
    %22 = vector.broadcast %21 : vector<1x32xf32> to vector<16x32xf32>
    %23 = arith.addf %20, %22 : vector<16x32xf32>
    %24 = arith.truncf %23 : vector<16x32xf32> to vector<16x32xbf16>
    %c0_9 = arith.constant 0 : index
    %c0_10 = arith.constant 0 : index
    %25 = vector.load %arg5[%c0_9, %c0_10] : memref<32x32xbf16, #tpu.memory_space<vmem>>, vector<32x32xbf16>
    %cst_11 = arith.constant dense<0.000000e+00> : vector<16x32xf32>
    %26 = tpu.matmul %24, %25, %cst_11 {dimension_numbers = #tpu.dot_dimension_numbers<[1], [0], [0], [1], [0, 0, 1, 1], [], []>} : vector<16x32xbf16>, vector<32x32xbf16>, vector<16x32xf32> -> vector<16x32xf32>
    %c0_12 = arith.constant 0 : index
    %c0_13 = arith.constant 0 : index
    %27 = vector.load %arg6[%c0_12, %c0_13] : memref<1x32xf32, #tpu.memory_space<vmem>>, vector<1x32xf32>
    %28 = vector.broadcast %27 : vector<1x32xf32> to vector<16x32xf32>
    %29 = arith.addf %26, %28 : vector<16x32xf32>
    %30 = arith.addf %0, %29 : vector<16x32xf32>
    %c0_14 = arith.constant 0 : index
    %c0_15 = arith.constant 0 : index
    %31 = vector.load %arg7[%c0_14, %c0_15] : memref<16x32xf32, #tpu.memory_space<vmem>>, vector<16x32xf32>
    tpu.vector_store %arg7[%c0_14, %c0_15], %30 {strides = array<i32>} : memref<16x32xf32, #tpu.memory_space<vmem>>, vector<16x32xf32>,
    return
  }
  func.func @transform_0(%arg0: i32, %arg1: memref<1xi32, #tpu.memory_space<smem>>) -> (i32, i32) {
    %c0_i32 = arith.constant 0 : i32
    %c0_i32_0 = arith.constant 0 : i32
    return %arg0, %c0_i32 : i32, i32
  }
  func.func @transform_1(%arg0: i32, %arg1: memref<1xi32, #tpu.memory_space<smem>>) -> (i32, i32) {
    %c0_i32 = arith.constant 0 : i32
    %c0_i32_0 = arith.constant 0 : i32
    %c0_i32_1 = arith.constant 0 : i32
    return %c0_i32, %c0_i32_0 : i32, i32
  }
  func.func @transform_2(%arg0: i32, %arg1: memref<1xi32, #tpu.memory_space<smem>>) -> (i32, i32) {
    %c0_i32 = arith.constant 0 : i32
    %c0_i32_0 = arith.constant 0 : i32
    %c0_i32_1 = arith.constant 0 : i32
    return %c0_i32, %c0_i32_0 : i32, i32
  }
  func.func @transform_3(%arg0: i32, %arg1: memref<1xi32, #tpu.memory_space<smem>>) -> (i32, i32) {
    %c0_i32 = arith.constant 0 : i32
    %c0_i32_0 = arith.constant 0 : i32
    %c0_i32_1 = arith.constant 0 : i32
    return %c0_i32, %c0_i32_0 : i32, i32
  }
  func.func @transform_4(%arg0: i32, %arg1: memref<1xi32, #tpu.memory_space<smem>>) -> (i32, i32) {
    %c0_i32 = arith.constant 0 : i32
    %c0_i32_0 = arith.constant 0 : i32
    %c0_i32_1 = arith.constant 0 : i32
    return %c0_i32, %c0_i32_0 : i32, i32
  }
  func.func @transform_5(%arg0: i32, %arg1: memref<1xi32, #tpu.memory_space<smem>>) -> (i32, i32) {
    %c0_i32 = arith.constant 0 : i32
    %c0_i32_0 = arith.constant 0 : i32
    return %arg0, %c0_i32 : i32, i32
  }
}

</mosaic_0001>

<llo_original>
// kernel: tpu_custom_call.1
$region0: #{tpu_custom_call.1}
  #allocation0 [shape = 'u32[]', space=smem, size = 0x4, offset = 0x4, fixed_abs, tag = 'smem constant byte address 0x4 - core index']
  #allocation1 [shape = 'u32[144,128]{1,0:T(1,128)}', space=vmem, size = 0x12000, scoped, tag = 'internal scratch']
  #allocation2 [shape = 's32[1]{0}', space=sflag, size = 0x4, scoped, tag = 'scoped memory for tpu_custom_call.1']
  #allocation3 [shape = 's32[1]{0:T(128)S(6)}', space=smem, size = 0x200, scoped, tag = 'prefetched SMEM operand 0']
  %s0 = inlined_call_operand.<no memory space> [shape: s32[1], index: 0, kind: input, shape index: {}]
  %s1 = inlined_call_operand.hbm [shape: f32[16,32], index: 1, kind: input, shape index: {}]
  %s2 = inlined_call_operand.vmem [shape: f32[1,32], index: 2, kind: input, shape index: {}]
  %s3 = inlined_call_operand.vmem [shape: f32[1,32], index: 3, kind: input, shape index: {}]
  %s4 = inlined_call_operand.hbm [shape: bf16[32,32], index: 4, kind: input, shape index: {}]
  %s5 = inlined_call_operand.vmem [shape: f32[1,32], index: 5, kind: input, shape index: {}]
  %s6 = inlined_call_operand.hbm [shape: f32[16,32], index: 6, kind: output, shape index: {}]
  %s7 = sld [smem:[#allocation0]]
  $region38: #{tpu_custom_call.1} parent=0
    _
  %s9 = ssub.s32 1, %s7
  %s10 = scalar_select 0, %s9, %s7
  %11 = sst [smem:[#allocation3]] %s0
  $region1: #{tpu_custom_call.1} parent=0
    #allocation4 [shape = 'u8[8192]{0}', space=vmem, size = 0x2000, scoped, tag = 'input window, operand 1, single buffered']
    #allocation5 [shape = 's32[1]{0}', space=sflag, size = 0x4, scoped, tag = 'scoped memory for tpu_custom_call.1']
    #allocation6 [shape = 's32[1]{0}', space=sflag, size = 0x4, scoped, tag = 'scoped memory for tpu_custom_call.1']
    #allocation7 [shape = 'u8[8192]{0}', space=vmem, size = 0x2000, scoped, tag = 'input window, operand 4, single buffered']
    #allocation8 [shape = 's32[1]{0}', space=sflag, size = 0x4, scoped, tag = 'scoped memory for tpu_custom_call.1']
    #allocation9 [shape = 'u8[8192]{0}', space=vmem, size = 0x2000, scoped, tag = 'output window, operand 0, single buffered']
    %12 = vsyncpa [#allocation5], 0
    %13 = vsyncpa [#allocation8], 0
    %14 = vsyncpa [#allocation6], 0
    // Predicated region
    $region2: #{tpu_custom_call.1} parent=1 // pred_check
      _
    $region3: #{tpu_custom_call.1} parent=1 // pred_check_branch
      %16 = sbr.rel (0) target = $region5
    $region4: #{tpu_custom_call.1} parent=1 // pred_region
      %s18 = ssub.s32 256, 256
      %19 = vsyncadd [#allocation5], %s18
      %s20 = sshll.u32 [#allocation4], 4
      %s21 = int_to_ptr.vmem [resolvable:$true] %s20
      %26 = dma.hbm_to_vmem [thread:$0]  %s1, 256, %s21, [#allocation5], 128, 128, 8
    $region5: #{tpu_custom_call.1} parent=1 // pred_fallthru
      _
    // Predicated region
    $region6: #{tpu_custom_call.1} parent=1 // pred_check
      _
    $region7: #{tpu_custom_call.1} parent=1 // pred_check_branch
      %28 = sbr.rel (0) target = $region9
    $region8: #{tpu_custom_call.1} parent=1 // pred_region
      _
    $region9: #{tpu_custom_call.1} parent=1 // pred_fallthru
      _
    // Predicated region
    $region10: #{tpu_custom_call.1} parent=1 // pred_check
      _
    $region11: #{tpu_custom_call.1} parent=1 // pred_check_branch
      %30 = sbr.rel (0) target = $region13
    $region12: #{tpu_custom_call.1} parent=1 // pred_region
      _
    $region13: #{tpu_custom_call.1} parent=1 // pred_fallthru
      _
    // Predicated region
    $region14: #{tpu_custom_call.1} parent=1 // pred_check
      _
    $region15: #{tpu_custom_call.1} parent=1 // pred_check_branch
      %32 = sbr.rel (0) target = $region17
    $region16: #{tpu_custom_call.1} parent=1 // pred_region
      %s34 = ssub.s32 256, 256
      %35 = vsyncadd [#allocation8], %s34
      %s36 = sshll.u32 [#allocation7], 4
      %s37 = int_to_ptr.vmem [resolvable:$true] %s36
      %42 = dma.hbm_to_vmem [thread:$0]  %s4, 256, %s37, [#allocation8], 64, 64, 4
    $region17: #{tpu_custom_call.1} parent=1 // pred_fallthru
      _
    // Predicated region
    $region18: #{tpu_custom_call.1} parent=1 // pred_check
      _
    $region19: #{tpu_custom_call.1} parent=1 // pred_check_branch
      %44 = sbr.rel (0) target = $region21
    $region20: #{tpu_custom_call.1} parent=1 // pred_region
      _
    $region21: #{tpu_custom_call.1} parent=1 // pred_fallthru
      _
    // Predicated region
    $region22: #{tpu_custom_call.1} parent=1 // pred_check
      _
    $region23: #{tpu_custom_call.1} parent=1 // pred_check_branch
      %46 = sbr.rel (0) target = $region25
    $region24: #{tpu_custom_call.1} parent=1 // pred_region
      %47 = dma.done [#allocation5], 256
    $region25: #{tpu_custom_call.1} parent=1 // pred_fallthru
      _
    // Predicated region
    $region26: #{tpu_custom_call.1} parent=1 // pred_check
      _
    $region27: #{tpu_custom_call.1} parent=1 // pred_check_branch
      %49 = sbr.rel (0) target = $region29
    $region28: #{tpu_custom_call.1} parent=1 // pred_region
      %50 = dma.done [#allocation8], 256
    $region29: #{tpu_custom_call.1} parent=1 // pred_fallthru
      _
    %v52 = vld [vmem:[#allocation4] sm:$0xff]
    %v53 = vld [vmem:[#allocation4 + $0x8] sm:$0xff]
    %vm54 = vcmask 261120
    %v55 = vsel %vm54, %v52, 0.0
    %56 = vadd.xlane.f32.xlu0 %v55
    %v57 = vpop.xlane.xlu0 %56
    %v58 = vsel %vm54, %v53, 0.0
    %59 = vadd.xlane.f32.xlu0 %v58
    %v60 = vpop.xlane.xlu0 %59
    %v61 = vrcp.pop 32.0
    %v62 = vmul.f32 %v57, %v61
    %v63 = vmul.f32 %v60, %v61
    %v64 = vsub.f32 %v52, %v62
    %v65 = vsub.f32 %v53, %v63
    %v66 = vmul.f32 %v64, %v64
    %v67 = vmul.f32 %v65, %v65
    %v68 = vsel %vm54, %v66, 0.0
    %69 = vadd.xlane.f32.xlu0 %v68
    %v70 = vpop.xlane.xlu0 %69
    %v71 = vsel %vm54, %v67, 0.0
    %72 = vadd.xlane.f32.xlu0 %v71
    %v73 = vpop.xlane.xlu0 %72
    %v74 = vmul.f32 %v70, 0.032258064
    %v75 = vmul.f32 %v73, 0.032258064
    %v76 = vrsqrt.pop %v74
    %v77 = vmul.f32 %v74, %v76
    %vm78 = vcmp.eq.f32.partialorder %v74, inf
    %v79 = vsel %vm78, %v74, %v77
    %vm80 = vcmp.eq.f32.partialorder %v74, 0.0
    %v81 = vand.u32 %v74, 2147483648
    %v82 = vsel %vm80, %v81, %v79
    %v83 = vrsqrt.pop %v75
    %v84 = vmul.f32 %v75, %v83
    %vm85 = vcmp.eq.f32.partialorder %v75, inf
    %v86 = vsel %vm85, %v75, %v84
    %vm87 = vcmp.eq.f32.partialorder %v75, 0.0
    %v88 = vand.u32 %v75, 2147483648
    %v89 = vsel %vm87, %v88, %v86
    %v90 = vadd.f32 %v82, 1e-06
    %v91 = vadd.f32 %v89, 1e-06
    %v92 = vrcp.pop %v90
    %v93 = vrcp.pop %v91
    %v94 = vld [vmem:[%s2] sm:$0x1]
    %v95 = vmul.f32 %v64, %v92
    %v96 = vmul.f32 %v65, %v93
    %v98 = vlaneseq
    %v99 = vshrl.u32 %v98, 7
    %v100 = vsub.s32 0, %v99
    %v101 = vrot.slane %v94, %v100
    %v103 = vmul.f32 %v101, %v95
    %v104 = vmul.f32 %v101, %v96
    %v105 = vld [vmem:[%s3] sm:$0x1]
    %v107 = vlaneseq
    %v108 = vshrl.u32 %v107, 7
    %v109 = vsub.s32 0, %v108
    %v110 = vrot.slane %v105, %v109
    %v112 = vadd.f32 %v103, %v110
    %v113 = vadd.f32 %v104, %v110
    %v114 = vpack.c.bf16 %v113, %v112
    %v115 = vld [vmem:[#allocation7] sm:$0xf]
    %v116 = vld [vmem:[#allocation7 + $0x4] sm:$0xf]
    %v117 = vld [vmem:[#allocation7 + $0x8] sm:$0xf]
    %v118 = vld [vmem:[#allocation7 + $0xc] sm:$0xf]
    %v119 = vld [vmem:[%s5] sm:$0x1]
    %v121 = vlaneseq
    %v122 = vshrl.u32 %v121, 7
    %v123 = vsub.s32 0, %v122
    %v124 = vrot.slane %v119, %v123
    %v130 = vunpack.c.l.b16 %v115
    %v131 = vunpack.c.l.b16 %v116
    %v132 = vunpack.c.l.b16 %v117
    %v133 = vunpack.c.l.b16 %v118
    %v134 = vpack.c.b16 %v131, %v130
    %v135 = vpack.c.b16 %v133, %v132
    %v139 = vsel %vm54, %v114, 0
    %141 = vmatprep.subr.bf16.mxu0 0
    %142 = vmatpush1.bf16.msra.mxu0 %v134
    %143 = vmatprep.subr.bf16.mxu0 0
    %144 = vmatpush1.bf16.msra.mxu0 %v135
    %145 = vmatprep.subr.bf16.mxu0 0
    %146 = vmatpush1.bf16.msra.mxu0 0
    %147 = vmatprep.subr.bf16.mxu0 0
    %148 = vmatpush1.bf16.msra.mxu0 0
    %149 = vmatprep.subr.bf16.mxu0 0
    %150 = vmatpush1.bf16.msra.mxu0 0
    %151 = vmatprep.subr.bf16.mxu0 0
    %152 = vmatpush1.bf16.msra.mxu0 0
    %153 = vmatprep.subr.bf16.mxu0 0
    %154 = vmatpush1.bf16.msra.mxu0 0
    %155 = vmatprep.subr.bf16.mxu0 0
    %156 = vmatpush1.bf16.msra.mxu0 0
    %157 = vmatprep.subr.bf16.mxu0 0
    %158 = vmatpush1.bf16.msra.mxu0 0
    %159 = vmatprep.subr.bf16.mxu0 0
    %160 = vmatpush1.bf16.msra.mxu0 0
    %161 = vmatprep.subr.bf16.mxu0 0
    %162 = vmatpush1.bf16.msra.mxu0 0
    %163 = vmatprep.subr.bf16.mxu0 0
    %164 = vmatpush1.bf16.msra.mxu0 0
    %165 = vmatprep.subr.bf16.mxu0 0
    %166 = vmatpush1.bf16.msra.mxu0 0
    %167 = vmatprep.subr.bf16.mxu0 0
    %168 = vmatpush1.bf16.msra.mxu0 0
    %169 = vmatprep.subr.bf16.mxu0 0
    %170 = vmatpush1.bf16.msra.mxu0 0
    %171 = vmatprep.subr.bf16.mxu0 0
    %172 = vmatpush1.bf16.msra.mxu0 0
    %173 = vmatprep.mubr.bf16.mxu0 0
    %174 = vmatmul.mubr.bf16.gmra.mrb[0].mxu0 %v139
    %v175 = vpop.f32.mrb[0].mxu0
    %v176 = vadd.f32 %v124, %v175
    %v177 = vpop.f32.mrb[0].mxu0
    %v178 = vpop.f32.mrb[0].mxu0
    %v179 = vadd.f32 %v124, %v178
    %v180 = vpop.f32.mrb[0].mxu0
    %181 = vdwg.mxu0
    %v182 = vadd.f32 %v52, %v176
    %v183 = vadd.f32 %v53, %v179
    %184 = vst.msk [vmem:[#allocation9] sm:$0xff] %vm54, %v182
    %185 = vst.msk [vmem:[#allocation9 + $0x8] sm:$0xff] %vm54, %v183
    // Predicated region
    $region30: #{tpu_custom_call.1} parent=1 // pred_check
      _
    $region31: #{tpu_custom_call.1} parent=1 // pred_check_branch
      %187 = sbr.rel (0) target = $region33
    $region32: #{tpu_custom_call.1} parent=1 // pred_region
      %s189 = ssub.s32 256, 256
      %190 = vsyncadd [#allocation6], %s189
      %s191 = sshll.u32 [#allocation9], 4
      %s192 = int_to_ptr.vmem [resolvable:$true] %s191
      %197 = dma.vmem_to_hbm [thread:$0]  %s192, 256, %s6, [#allocation6], 128, 128, 8
    $region33: #{tpu_custom_call.1} parent=1 // pred_fallthru
      _
    // Predicated region
    $region34: #{tpu_custom_call.1} parent=1 // pred_check
      _
    $region35: #{tpu_custom_call.1} parent=1 // pred_check_branch
      %199 = sbr.rel (0) target = $region37
    $region36: #{tpu_custom_call.1} parent=1 // pred_region
      %200 = dma.done [#allocation6], 256
    $region37: #{tpu_custom_call.1} parent=1 // pred_fallthru
      _
    %201 = vsyncpa [#allocation5], 1
    %202 = vsyncpa [#allocation8], 1
    %203 = vsyncpa [#allocation6], 1

</llo_original>
